<compile_context>
chip_gen: v6e
topology: v6e:2x2x1
jax: 0.10.0
libtpu: 0.0.40
codegen_flags: <defaults>
</compile_context>

<pallas_src>
import jax
import jax.numpy as jnp
from jax.experimental import pallas as pl
from jax.experimental.pallas import tpu as pltpu  # noqa: F401  (TPU backend)


def _affine_kernel(x_ref, w_ref, b_ref, o_ref):
    # Single fused GEMM + bias; all operands fully VMEM-resident.
    # Default MXU precision is fine here (checked to 1e-4 vs the layer-by-layer
    # f32 reference); raise to lax.Precision.HIGHEST only if parity tightens.
    o_ref[...] = (
        jnp.dot(x_ref[...], w_ref[...], preferred_element_type=jnp.float32)
        + b_ref[...]
    ).astype(o_ref.dtype)


def fold_params(params):
    """Collapse the 3 bias-only linear layers into one affine map (f32)."""
    w1, b1, w2, b2, w3, b3 = params
    w = (w1 @ w2) @ w3                     # (24, 32)
    b = (b1 @ w2 + b2) @ w3 + b3           # (1, 32)
    return w, b


def test_model_forward(x, folded_params):
    """x: (batch, seq, 24) f32.  Returns (batch, seq, 32) f32."""
    w, b = folded_params
    batch, seq, d_in = x.shape
    d_out = w.shape[1]
    m = batch * seq

    # Flatten leading dims only (free reshape); NO padding, NO trailing slice.
    x2d = x.reshape(m, d_in)

    # Full-array blocks (block_shape == array shape) satisfy TPU tiling rules
    # for these tiny operands; single grid point, no pipelining.
    full = lambda a: pl.BlockSpec(a.shape, lambda: (0,) * a.ndim)

    cost = pl.CostEstimate(
        flops=2 * m * d_in * d_out,
        transcendentals=0,
        bytes_accessed=(m * d_in + d_in * d_out + d_out + m * d_out) * 4,
    )

    out2d = pl.pallas_call(
        _affine_kernel,
        out_shape=jax.ShapeDtypeStruct((m, d_out), jnp.float32),
        in_specs=[full(x2d), full(w), full(b)],
        out_specs=pl.BlockSpec((m, d_out), lambda: (0, 0)),
        cost_estimate=cost,
    )(x2d, w, b)

    return out2d.reshape(batch, seq, d_out)


def init_params(key):
    """Deterministic synthetic weights matching the torch module shapes.

    torch.nn.Linear(in, out) has weight (out, in) and bias (out,); we store
    weights transposed as (in, out) and biases as (1, out).
    """
    ks = jax.random.split(key, 6)

    def linear(kw, kb, fan_in, fan_out):
        bound = 1.0 / jnp.sqrt(fan_in)
        w = jax.random.uniform(kw, (fan_in, fan_out), jnp.float32, -bound, bound)
        b = jax.random.uniform(kb, (1, fan_out), jnp.float32, -bound, bound)
        return w, b

    w1, b1 = linear(ks[0], ks[1], 24, 32)   # subm.fc1
    w2, b2 = linear(ks[2], ks[3], 32, 64)   # subm.fc2
    w3, b3 = linear(ks[4], ks[5], 64, 32)   # fc
    return (w1, b1, w2, b2, w3, b3)


if __name__ == "__main__":
    key = jax.random.PRNGKey(0)
    k_x, k_p = jax.random.split(key)

    # get_example_input(): torch.randn(2, 5, 24)
    x = jax.random.normal(k_x, (2, 5, 24), dtype=jnp.float32)
    params = init_params(k_p)

    folded = fold_params(params)            # parameter-prep time (once)
    out = test_model_forward(x, folded)
    out = jax.block_until_ready(out)

    # Cross-check against the original layer-by-layer math (torch semantics).
    w1, b1, w2, b2, w3, b3 = params
    ref = ((x.reshape(10, 24) @ w1 + b1) @ w2 + b2) @ w3 + b3
    ref = ref.reshape(2, 5, 32)
    assert out.shape == (2, 5, 32) and out.dtype == jnp.float32
    assert jnp.allclose(out, ref, atol=1e-4, rtol=1e-4), (
        float(jnp.max(jnp.abs(out - ref)))
    )

    print("KERNEL_OK")
</pallas_src>

<mosaic_0001>
module attributes {stable_mosaic.version = 11 : i64} {
  func.func @_affine_kernel(%arg0: memref<10x24xf32, #tpu.memory_space<vmem>>, %arg1: memref<24x32xf32, #tpu.memory_space<vmem>>, %arg2: memref<1x32xf32, #tpu.memory_space<vmem>>, %arg3: memref<10x32xf32, #tpu.memory_space<vmem>>) attributes {dimension_semantics = [], scalar_prefetch = 0 : i64, scratch_operands = 0 : i64, tpu.core_type = #tpu.core_type<tc>} {
    %c0 = arith.constant 0 : index
    %c0_0 = arith.constant 0 : index
    %0 = vector.load %arg0[%c0, %c0_0] : memref<10x24xf32, #tpu.memory_space<vmem>>, vector<10x24xf32>
    %c0_1 = arith.constant 0 : index
    %c0_2 = arith.constant 0 : index
    %1 = vector.load %arg1[%c0_1, %c0_2] : memref<24x32xf32, #tpu.memory_space<vmem>>, vector<24x32xf32>
    %cst = arith.constant dense<0.000000e+00> : vector<10x32xf32>
    %2 = tpu.matmul %0, %1, %cst {dimension_numbers = #tpu.dot_dimension_numbers<[1], [0], [0], [1], [0, 0, 1, 1], [], []>} : vector<10x24xf32>, vector<24x32xf32>, vector<10x32xf32> -> vector<10x32xf32>
    %c0_3 = arith.constant 0 : index
    %c0_4 = arith.constant 0 : index
    %3 = vector.load %arg2[%c0_3, %c0_4] : memref<1x32xf32, #tpu.memory_space<vmem>>, vector<1x32xf32>
    %4 = vector.broadcast %3 : vector<1x32xf32> to vector<10x32xf32>
    %5 = arith.addf %2, %4 : vector<10x32xf32>
    %c0_5 = arith.constant 0 : index
    %c0_6 = arith.constant 0 : index
    %6 = vector.load %arg3[%c0_5, %c0_6] : memref<10x32xf32, #tpu.memory_space<vmem>>, vector<10x32xf32>
    tpu.vector_store %arg3[%c0_5, %c0_6], %5 {strides = array<i32>} : memref<10x32xf32, #tpu.memory_space<vmem>>, vector<10x32xf32>,
    return
  }
}

</mosaic_0001>

<llo_original>
// kernel: tpu_custom_call.1
$region0: #{tpu_custom_call.1}
  #allocation0 [shape = 'u32[]', space=smem, size = 0x4, offset = 0x4, fixed_abs, tag = 'smem constant byte address 0x4 - core index']
  #allocation1 [shape = 'u32[144,128]{1,0:T(1,128)}', space=vmem, size = 0x12000, scoped, tag = 'internal scratch']
  %s0 = inlined_call_operand.hbm [shape: f32[10,24], index: 0, kind: input, shape index: {}]
  %s1 = inlined_call_operand.hbm [shape: f32[24,32], index: 1, kind: input, shape index: {}]
  %s2 = inlined_call_operand.vmem [shape: f32[1,32], index: 2, kind: input, shape index: {}]
  %s3 = inlined_call_operand.hbm [shape: f32[10,32], index: 3, kind: output, shape index: {}]
  %s4 = sld [smem:[#allocation0]]
  $region30: #{tpu_custom_call.1} parent=0
    _
  %s6 = ssub.s32 1, %s4
  %s7 = scalar_select 0, %s6, %s4
  $region1: #{tpu_custom_call.1} parent=0
    #allocation2 [shape = 'u8[8192]{0}', space=vmem, size = 0x2000, scoped, tag = 'input window, operand 0, single buffered']
    #allocation3 [shape = 's32[1]{0}', space=sflag, size = 0x4, scoped, tag = 'scoped memory for tpu_custom_call.1']
    #allocation4 [shape = 's32[1]{0}', space=sflag, size = 0x4, scoped, tag = 'scoped memory for tpu_custom_call.1']
    #allocation5 [shape = 'u8[12288]{0}', space=vmem, size = 0x3000, scoped, tag = 'input window, operand 1, single buffered']
    #allocation6 [shape = 's32[1]{0}', space=sflag, size = 0x4, scoped, tag = 'scoped memory for tpu_custom_call.1']
    #allocation7 [shape = 'u8[8192]{0}', space=vmem, size = 0x2000, scoped, tag = 'output window, operand 0, single buffered']
    %8 = vsyncpa [#allocation3], 0
    %9 = vsyncpa [#allocation6], 0
    %10 = vsyncpa [#allocation4], 0
    // Predicated region
    $region2: #{tpu_custom_call.1} parent=1 // pred_check
      _
    $region3: #{tpu_custom_call.1} parent=1 // pred_check_branch
      %12 = sbr.rel (0) target = $region5
    $region4: #{tpu_custom_call.1} parent=1 // pred_region
      %s14 = ssub.s32 256, 256
      %15 = vsyncadd [#allocation3], %s14
      %s16 = sshll.u32 [#allocation2], 4
      %s17 = int_to_ptr.vmem [resolvable:$true] %s16
      %22 = dma.hbm_to_vmem [thread:$0]  %s0, 256, %s17, [#allocation3], 128, 128, 8
    $region5: #{tpu_custom_call.1} parent=1 // pred_fallthru
      _
    // Predicated region
    $region6: #{tpu_custom_call.1} parent=1 // pred_check
      _
    $region7: #{tpu_custom_call.1} parent=1 // pred_check_branch
      %24 = sbr.rel (0) target = $region9
    $region8: #{tpu_custom_call.1} parent=1 // pred_region
      %s26 = ssub.s32 384, 384
      %27 = vsyncadd [#allocation6], %s26
      %s28 = sshll.u32 [#allocation5], 4
      %s29 = int_to_ptr.vmem [resolvable:$true] %s28
      %34 = dma.hbm_to_vmem [thread:$0]  %s1, 384, %s29, [#allocation6], 128, 128, 8
    $region9: #{tpu_custom_call.1} parent=1 // pred_fallthru
      _
    // Predicated region
    $region10: #{tpu_custom_call.1} parent=1 // pred_check
      _
    $region11: #{tpu_custom_call.1} parent=1 // pred_check_branch
      %36 = sbr.rel (0) target = $region13
    $region12: #{tpu_custom_call.1} parent=1 // pred_region
      _
    $region13: #{tpu_custom_call.1} parent=1 // pred_fallthru
      _
    // Predicated region
    $region14: #{tpu_custom_call.1} parent=1 // pred_check
      _
    $region15: #{tpu_custom_call.1} parent=1 // pred_check_branch
      %38 = sbr.rel (0) target = $region17
    $region16: #{tpu_custom_call.1} parent=1 // pred_region
      %39 = dma.done [#allocation3], 256
    $region17: #{tpu_custom_call.1} parent=1 // pred_fallthru
      _
    // Predicated region
    $region18: #{tpu_custom_call.1} parent=1 // pred_check
      _
    $region19: #{tpu_custom_call.1} parent=1 // pred_check_branch
      %41 = sbr.rel (0) target = $region21
    $region20: #{tpu_custom_call.1} parent=1 // pred_region
      %42 = dma.done [#allocation6], 384
    $region21: #{tpu_custom_call.1} parent=1 // pred_fallthru
      _
    %v43 = vld [vmem:[#allocation2] sm:$0xff]
    %v44 = vld [vmem:[#allocation2 + $0x8] sm:$0x3]
    %v45 = vld [vmem:[#allocation5] sm:$0xff]
    %v46 = vld [vmem:[#allocation5 + $0x8] sm:$0xff]
    %v47 = vld [vmem:[#allocation5 + $0x10] sm:$0xff]
    %v48 = vld [vmem:[%s2] sm:$0x1]
    %v50 = vlaneseq
    %v51 = vshrl.u32 %v50, 7
    %v52 = vsub.s32 0, %v51
    %v53 = vrot.slane %v48, %v52
    %vm55 = vcmask 195584
    %v57 = vsel %vm55, %v43, 0
    %v60 = vsel %vm55, %v44, 0
    %62 = vmatprep.subr.mxu0 0.0
    %63 = vmatpush1.msra.mxu0 0.0
    %64 = vmatprep.subr.mxu0 0.0
    %65 = vmatpush1.msra.mxu0 0.0
    %66 = vmatprep.subr.mxu0 0.0
    %67 = vmatpush1.msra.mxu0 0.0
    %68 = vmatprep.subr.mxu0 0.0
    %69 = vmatpush1.msra.mxu0 0.0
    %70 = vmatprep.subr.mxu0 0.0
    %71 = vmatpush1.msra.mxu0 0.0
    %72 = vmatprep.subr.mxu0 0.0
    %73 = vmatpush1.msra.mxu0 0.0
    %74 = vmatprep.subr.mxu0 0.0
    %75 = vmatpush1.msra.mxu0 0.0
    %76 = vmatprep.subr.mxu0 0.0
    %77 = vmatpush1.msra.mxu0 0.0
    %78 = vmatprep.subr.mxu0 0.0
    %79 = vmatpush1.msra.mxu0 0.0
    %80 = vmatprep.subr.mxu0 0.0
    %81 = vmatpush1.msra.mxu0 0.0
    %82 = vmatprep.subr.mxu0 0.0
    %83 = vmatpush1.msra.mxu0 0.0
    %84 = vmatprep.subr.mxu0 0.0
    %85 = vmatpush1.msra.mxu0 0.0
    %86 = vmatprep.subr.mxu0 0.0
    %87 = vmatpush1.msra.mxu0 0.0
    %88 = vmatprep.subr.mxu0 0.0
    %89 = vmatpush1.msra.mxu0 %v47
    %90 = vmatprep.subr.mxu0 0.0
    %91 = vmatpush1.msra.mxu0 %v46
    %92 = vmatprep.subr.mxu0 0.0
    %93 = vmatpush1.msra.mxu0 %v45
    %94 = vmatprep.subr.mxu0 0.0
    %95 = vmatpush2.msra.mxu0 0.0
    %96 = vmatprep.subr.mxu0 0.0
    %97 = vmatpush2.msra.mxu0 0.0
    %98 = vmatprep.subr.mxu0 0.0
    %99 = vmatpush2.msra.mxu0 0.0
    %100 = vmatprep.subr.mxu0 0.0
    %101 = vmatpush2.msra.mxu0 0.0
    %102 = vmatprep.subr.mxu0 0.0
    %103 = vmatpush2.msra.mxu0 0.0
    %104 = vmatprep.subr.mxu0 0.0
    %105 = vmatpush2.msra.mxu0 0.0
    %106 = vmatprep.subr.mxu0 0.0
    %107 = vmatpush2.msra.mxu0 0.0
    %108 = vmatprep.subr.mxu0 0.0
    %109 = vmatpush2.msra.mxu0 0.0
    %110 = vmatprep.subr.mxu0 0.0
    %111 = vmatpush2.msra.mxu0 0.0
    %112 = vmatprep.subr.mxu0 0.0
    %113 = vmatpush2.msra.mxu0 0.0
    %114 = vmatprep.subr.mxu0 0.0
    %115 = vmatpush2.msra.mxu0 0.0
    %116 = vmatprep.subr.mxu0 0.0
    %117 = vmatpush2.msra.mxu0 0.0
    %118 = vmatprep.subr.mxu0 0.0
    %119 = vmatpush2.msra.mxu0 0.0
    %120 = vmatprep.subr.mxu0 0.0
    %121 = vmatpush2.msra.mxu0 0.0
    %122 = vmatprep.subr.mxu0 0.0
    %123 = vmatpush2.msra.mxu0 0.0
    %124 = vmatprep.subr.mxu0 0.0
    %125 = vmatpush2.msra.mxu0 0.0
    %126 = vmatprep.mubr.f32.mxu0 0.0
    %127 = vmatmul.mubr.f32.gmra.mxu0 %v57
    %v128 = vpop.f32.mrf.mxu0
    %v129 = vadd.f32 %v53, %v128
    %v130 = vpop.f32.mrf.mxu0
    %131 = vmatprep.mubr.f32.mxu0 0.0
    %132 = vmatmul.mubr.f32.gmra.mxu0 %v60
    %v133 = vpop.f32.mrf.mxu0
    %v134 = vadd.f32 %v53, %v133
    %v135 = vpop.f32.mrf.mxu0
    %136 = vdwg.mxu0
    %vm137 = vcmask 261120
    %138 = vst.msk [vmem:[#allocation7] sm:$0xff] %vm137, %v129
    %vm139 = vcmask 254976
    %140 = vst.msk [vmem:[#allocation7 + $0x8] sm:$0x3] %vm139, %v134
    // Predicated region
    $region22: #{tpu_custom_call.1} parent=1 // pred_check
      _
    $region23: #{tpu_custom_call.1} parent=1 // pred_check_branch
      %142 = sbr.rel (0) target = $region25
    $region24: #{tpu_custom_call.1} parent=1 // pred_region
      %s144 = ssub.s32 256, 256
      %145 = vsyncadd [#allocation4], %s144
      %s146 = sshll.u32 [#allocation7], 4
      %s147 = int_to_ptr.vmem [resolvable:$true] %s146
      %152 = dma.vmem_to_hbm [thread:$0]  %s147, 256, %s3, [#allocation4], 128, 128, 8
    $region25: #{tpu_custom_call.1} parent=1 // pred_fallthru
      _
    // Predicated region
    $region26: #{tpu_custom_call.1} parent=1 // pred_check
      _
    $region27: #{tpu_custom_call.1} parent=1 // pred_check_branch
      %154 = sbr.rel (0) target = $region29
    $region28: #{tpu_custom_call.1} parent=1 // pred_region
      %155 = dma.done [#allocation4], 256
    $region29: #{tpu_custom_call.1} parent=1 // pred_fallthru
      _
    %156 = vsyncpa [#allocation3], 1
    %157 = vsyncpa [#allocation6], 1
    %158 = vsyncpa [#allocation4], 1

</llo_original>
